<compile_context>
chip_gen: v5e
topology: v5e:2x2
jax: 0.10.0
libtpu: 0.0.40
codegen_flags: <defaults>
</compile_context>

<pallas_src>
import functools

import jax
import jax.numpy as jnp
from jax import lax
from jax.experimental import pallas as pl
from jax.experimental.pallas import tpu as pltpu


# ---------------------------------------------------------------------------
# Constants for the FD forward-modeling stand-in
# ---------------------------------------------------------------------------
NT = 32              # time steps / trace length
N_TOTAL_SHOTS = 4
DT = 1.0             # time step (scaled units)
DX = 10.0            # grid spacing (scaled units)
SRC_Z = 2            # source depth row (must be < SRC_ROWS)
REC_Z = 2            # receiver depth row
SRC_X0 = 16          # source x position = SRC_X0 + shot_id * SRC_DX
SRC_DX = 32
SRC_ROWS = 8         # sublane tile holding the source row


# ---------------------------------------------------------------------------
# Padding (stand-in for ft.padding): replicate edges into the PML/pad zone
# ---------------------------------------------------------------------------
def pad_model(x, nz_orig, nx_orig, nz, nx, npml, npad):
    # TODO(synk): the original ft.padding may resample nz_orig->nz first;
    #             here nz == nz_orig and nx == nx_orig (edge-replicate pad only).
    assert (nz, nx) == (nz_orig, nx_orig)
    return jnp.pad(x.astype(jnp.float32),
                   ((npml, npml + npad), (npml, npml)), mode="edge")


def _rcp(x):
    """EUP approx reciprocal + one Newton step (~f32 accuracy, no exact divide)."""
    r = pl.reciprocal(x, approx=True)
    return r * (2.0 - x * r)


# ---------------------------------------------------------------------------
# Kernel 1: Gassmann rock physics -> shot-invariant FD coefficient fields
#           (PHI, CC, SW) + Mask blend  ->  (c_lam, c_2mu, c_buoy)
# ---------------------------------------------------------------------------
def _gassmann_kernel(phi_ref, cc_ref, sw_ref, phi0_ref, cc0_ref, sw0_ref,
                     mask_ref, clam_ref, c2mu_ref, cbuoy_ref, *, dtdx):
    m = mask_ref[...]
    om = 1.0 - m
    phi = m * phi_ref[...] + om * phi0_ref[...]
    cc = m * cc_ref[...] + om * cc0_ref[...]
    sw = m * sw_ref[...] + om * sw0_ref[...]

    # Guard the /phi and /(1-phi) terms against degenerate blends (the
    # reference would produce Inf/NaN there); no effect for physical 0<phi<1.
    phi = jnp.clip(phi, 1e-6, 1.0 - 1e-6)
    omphi = 1.0 - phi

    k_q, k_c, k_w, k_h = 37.0e9, 21.0e9, 2.25e9, 0.04e9
    mu_q, mu_c = 44.0e9, 10.0e9
    rho_q, rho_c, rho_w, rho_h = 2.65e3, 2.55e3, 1.0e3, 0.1e3
    cs = 20.0

    rho_f = rho_w * sw + rho_h * (1.0 - sw)
    k_f = k_w * sw + k_h * (1.0 - sw)
    k_s = k_c * cc + k_q * (1.0 - cc)
    mu_s = mu_c * cc + mu_q * (1.0 - cc)
    rho_s = rho_c * cc + rho_q * (1.0 - cc)

    inv_ks = _rcp(k_s)
    k_d = k_s * omphi * _rcp(1.0 + cs * phi)
    mu_d = mu_s * omphi * _rcp(1.0 + 1.5 * cs * phi)

    kd_ks = k_d * inv_ks
    delta = omphi * _rcp(phi) * (k_f * inv_ks) * (1.0 - kd_ks * _rcp(omphi))
    k_u = (phi * k_d + (1.0 - (1.0 + phi) * kd_ks) * k_f) * _rcp(phi * (1.0 + delta))
    rho = rho_f * phi + rho_s * omphi

    # rho cancels algebraically in Lambda = rho*(vp^2 - 2 vs^2), Mu = rho*vs^2:
    #   Lambda = (k_u - 1.25*mu_d)/1e6,  Mu = mu_d/1e6   (no sqrt, no /rho)
    # NOTE: 0.75*mu_d kept to match the PyTorch reference (it uses 0.75, not 4/3).
    lam = (k_u - 1.25 * mu_d) * 1.0e-6
    mu = mu_d * 1.0e-6

    # DT/DX folded in once here; these fields are shot-invariant.
    clam_ref[...] = dtdx * lam
    c2mu_ref[...] = (2.0 * dtdx) * mu
    cbuoy_ref[...] = dtdx * _rcp(rho)


def gassmann_coeffs(PHI, CC, SW, PHI_ref, CC_ref, SW_ref, Mask, *, dt=DT, dx=DX):
    nz, nx = PHI.shape
    # z-tiled, lane-dense (full nx) grid: one block at demo size, large tiles
    # at production size so 7 double-buffered inputs never blow scoped VMEM.
    tz = nz
    if nz > 512 and nz % 8 == 0:
        for cand in (512, 256, 128, 64, 32, 16, 8):
            if nz % cand == 0:
                tz = cand
                break
    spec = pl.BlockSpec((tz, nx), lambda i: (i, 0))
    out = jax.ShapeDtypeStruct((nz, nx), jnp.float32)
    kern = functools.partial(_gassmann_kernel, dtdx=dt / dx)
    return pl.pallas_call(
        kern,
        grid=(nz // tz,),
        out_shape=(out, out, out),
        in_specs=[spec] * 7,
        out_specs=(spec, spec, spec),
        compiler_params=pltpu.CompilerParams(
            dimension_semantics=("parallel",),
            vmem_limit_bytes=48 * 1024 * 1024),
    )(PHI, CC, SW, PHI_ref, CC_ref, SW_ref, Mask)


# ---------------------------------------------------------------------------
# Kernel 2: elastic FD forward modeling (stand-in for the fwi_ops CUDA op)
# ---------------------------------------------------------------------------
def _obscalc_kernel(sid_ref,                                 # scalar prefetch (SMEM)
                    clam_ref, c2mu_ref, cbuoy_ref, stf_ref,  # inputs
                    out_ref,                                 # (NT, NX) output block
                    srcm_ref):                               # (SRC_ROWS, NX) scratch
    nzp, nxp = clam_ref.shape
    nt = out_ref.shape[0]
    src_rows = srcm_ref.shape[0]

    shot = pl.program_id(0)
    sid = sid_ref[shot]                       # actual shot index (geometry)
    src_x = SRC_X0 + sid * SRC_DX             # synthetic per-shot geometry

    # DT-scaled one-hot source mask, restricted to the sublane tile holding SRC_Z
    zi = lax.broadcasted_iota(jnp.int32, (src_rows, nxp), 0)
    xi = lax.broadcasted_iota(jnp.int32, (src_rows, nxp), 1)
    srcm_ref[...] = jnp.where((zi == SRC_Z) & (xi == src_x),
                              DT, 0.0).astype(jnp.float32)

    zero = jnp.zeros((nzp, nxp), jnp.float32)

    def step(t, carry):
        vx, vz, sxx, szz, sxz = carry                        # wavefields live in vregs

        # staggered forward/backward differences, periodic wrap
        # TODO(synk): CPML absorbing boundaries of the CUDA reference not reproduced.
        dvx_dx = jnp.roll(vx, -1, axis=1) - vx
        dvz_dz = jnp.roll(vz, -1, axis=0) - vz
        dvx_dz = vx - jnp.roll(vx, 1, axis=0)
        dvz_dx = vz - jnp.roll(vz, 1, axis=1)

        amp = stf_ref[shot, t]                               # scalar SMEM read of STF sample
        clam = clam_ref[...]
        c2mu = c2mu_ref[...]

        # el_stress update (DT/DX already folded into the shot-invariant coefficients)
        a = clam * (dvx_dx + dvz_dz)
        sxx = sxx + a + c2mu * dvx_dx
        szz = szz + a + c2mu * dvz_dz
        sxz = sxz + c2mu * (0.5 * (dvx_dz + dvz_dx))

        # point-source injection into szz: touch only the top sublane tile
        inj = szz[:src_rows, :] + amp * srcm_ref[...]
        if nzp > src_rows:
            szz = jnp.concatenate([inj, szz[src_rows:, :]], axis=0)
        else:
            szz = inj

        dsxx_dx = sxx - jnp.roll(sxx, 1, axis=1)
        dsxz_dz = sxz - jnp.roll(sxz, 1, axis=0)
        dsxz_dx = jnp.roll(sxz, -1, axis=1) - sxz
        dszz_dz = jnp.roll(szz, -1, axis=0) - szz

        # el_velocity update
        cb = cbuoy_ref[...]
        vx = vx + cb * (dsxx_dx + dsxz_dz)
        vz = vz + cb * (dsxz_dx + dszz_dz)

        # record vz along the receiver row directly into the output block
        # TODO(synk): optional few-% win: buffer 8 rows and flush per full tile;
        #             optional: move z-differences onto the (idle) MXU.
        out_ref[t, :] = vz[REC_Z, :]
        return (vx, vz, sxx, szz, sxz)

    # unroll=2: the 40-vreg field carry plus per-step temporaries spill through
    # the single vector-store slot at higher unroll (worst on v5e).
    lax.fori_loop(0, nt, step, (zero, zero, zero, zero, zero), unroll=2)


def obscalc(c_lam, c_2mu, c_buoy, Stf, shot_ids):
    shot_ids = shot_ids.astype(jnp.int32)
    n_run = shot_ids.shape[0]

    # keep the shot axis even so both v7x TensorCores get work (v5e/v6e unaffected)
    if n_run % 2:
        shot_ids_run = jnp.concatenate([shot_ids, shot_ids[-1:]])
    else:
        shot_ids_run = shot_ids
    n_launch = shot_ids_run.shape[0]

    nzp, nxp = c_lam.shape
    nt = Stf.shape[1]

    # gather only the launched STF rows: the full (N_TOTAL_SHOTS, NT) table in
    # SMEM pads to [ceil(rows/8)*8, ceil(NT/128)*128] words and does not scale.
    stf_sel = jnp.take(Stf.astype(jnp.float32), shot_ids_run, axis=0)

    # TODO(synk): for production fields on v7x (64 MiB VMEM), single-buffer the
    #             shot-invariant coefficient inputs and z-tile with halo rows.
    grid_spec = pltpu.PrefetchScalarGridSpec(
        num_scalar_prefetch=1,
        grid=(n_launch,),
        in_specs=[
            pl.BlockSpec((nzp, nxp), lambda s, sid: (0, 0)),      # c_lam
            pl.BlockSpec((nzp, nxp), lambda s, sid: (0, 0)),      # c_2mu
            pl.BlockSpec((nzp, nxp), lambda s, sid: (0, 0)),      # c_buoy
            pl.BlockSpec(memory_space=pltpu.MemorySpace.SMEM),    # gathered STF rows
        ],
        out_specs=pl.BlockSpec((None, nt, nxp), lambda s, sid: (s, 0, 0)),
        scratch_shapes=[pltpu.VMEM((min(SRC_ROWS, nzp), nxp), jnp.float32)],
    )

    out = pl.pallas_call(
        _obscalc_kernel,
        out_shape=jax.ShapeDtypeStruct((n_launch, nt, nxp), jnp.float32),
        grid_spec=grid_spec,
        compiler_params=pltpu.CompilerParams(
            dimension_semantics=("parallel",),                    # shots are independent
            vmem_limit_bytes=48 * 1024 * 1024),
    )(shot_ids_run, c_lam, c_2mu, c_buoy, stf_sel)
    return out[:n_run]


# ---------------------------------------------------------------------------
# Module-equivalent wrapper
# ---------------------------------------------------------------------------
class FWIRockPhysicsGassmann:
    """JAX/Pallas equivalent of FWI_Rock_Physics_gassmann."""

    def __init__(self, PHI, CC, SW, Stf, opt, Mask=None,
                 PHI_bounds=None, CC_bounds=None, SW_bounds=None):
        self.nz = opt['nz']
        self.nx = opt['nx']
        self.nz_orig = opt['nz_orig']
        self.nx_orig = opt['nx_orig']
        self.nPml = opt['nPml']
        self.nPad = opt['nPad']
        self.Bounds = {}
        if PHI_bounds is not None:
            self.Bounds['PHI'] = PHI_bounds
        if CC_bounds is not None:
            self.Bounds['CC'] = CC_bounds
        if SW_bounds is not None:
            self.Bounds['SW'] = SW_bounds

        self.PHI = jnp.asarray(PHI, jnp.float32)
        self.CC = jnp.asarray(CC, jnp.float32)
        self.SW = jnp.asarray(SW, jnp.float32)

        # frozen padded reference models (register_buffer equivalents)
        self.PHI_ref = pad_model(self.PHI, self.nz_orig, self.nx_orig,
                                 self.nz, self.nx, self.nPml, self.nPad)
        self.CC_ref = pad_model(self.CC, self.nz_orig, self.nx_orig,
                                self.nz, self.nx, self.nPml, self.nPad)
        self.SW_ref = pad_model(self.SW, self.nz_orig, self.nx_orig,
                                self.nz, self.nx, self.nPml, self.nPad)

        nzp = self.nz + 2 * self.nPml + self.nPad
        nxp = self.nx + 2 * self.nPml
        if Mask is None:
            self.Mask = jnp.ones((nzp, nxp), jnp.float32)
        else:
            self.Mask = jnp.asarray(Mask, jnp.float32)

        self.Stf = jnp.asarray(Stf, jnp.float32)
        self.para_fname = opt['para_fname']  # TODO(synk): JSON geometry/config unused

    def __call__(self, Shot_ids, ngpu=1):
        PHI_pad = pad_model(self.PHI, self.nz_orig, self.nx_orig,
                            self.nz, self.nx, self.nPml, self.nPad)
        CC_pad = pad_model(self.CC, self.nz_orig, self.nx_orig,
                           self.nz, self.nx, self.nPml, self.nPad)
        SW_pad = pad_model(self.SW, self.nz_orig, self.nx_orig,
                           self.nz, self.nx, self.nPml, self.nPad)

        # shot-invariant FD coefficient fields (Lambda/Mu/Den with DT/DX folded)
        c_lam, c_2mu, c_buoy = gassmann_coeffs(
            PHI_pad, CC_pad, SW_pad,
            self.PHI_ref, self.CC_ref, self.SW_ref, self.Mask)

        # ngpu has no meaning on a single TensorCore; ignored.
        return obscalc(c_lam, c_2mu, c_buoy, self.Stf, Shot_ids)


# ---------------------------------------------------------------------------
# Demo / smoke test
# ---------------------------------------------------------------------------
if __name__ == "__main__":
    NZ_ORIG, NX_ORIG = 48, 112
    NPML, NPAD = 8, 0          # padded model: (64, 128) -> TPU-tile friendly
    opt = dict(nz=NZ_ORIG, nx=NX_ORIG, nz_orig=NZ_ORIG, nx_orig=NX_ORIG,
               nPml=NPML, nPad=NPAD, para_fname="unused.json")

    key = jax.random.PRNGKey(0)
    k_phi, k_cc, k_sw, k_stf = jax.random.split(key, 4)

    # deterministic synthetic rock-physics model (porosity, clay, saturation)
    PHI = jnp.clip(0.25 + 0.03 * jax.random.normal(k_phi, (NZ_ORIG, NX_ORIG), jnp.float32),
                   0.05, 0.40)
    CC = jnp.clip(0.30 + 0.05 * jax.random.normal(k_cc, (NZ_ORIG, NX_ORIG), jnp.float32),
                  0.05, 0.60)
    SW = jnp.clip(0.60 + 0.10 * jax.random.normal(k_sw, (NZ_ORIG, NX_ORIG), jnp.float32),
                  0.05, 0.95)

    # source-time functions: one Ricker-ish wavelet per shot
    t = jnp.arange(NT, dtype=jnp.float32)
    arg = (t - 8.0) * 0.5
    ricker = (1.0 - 2.0 * arg * arg) * jnp.exp(-arg * arg)
    amp = 1.0 + 0.1 * jax.random.normal(k_stf, (N_TOTAL_SHOTS, 1), jnp.float32)
    Stf = amp * ricker[None, :]                         # (N_TOTAL_SHOTS, NT)

    model = FWIRockPhysicsGassmann(PHI, CC, SW, Stf, opt)

    Shot_ids = jnp.array([0, 2], dtype=jnp.int32)
    obs = jax.block_until_ready(model(Shot_ids))

    nxp = NX_ORIG + 2 * NPML
    assert obs.shape == (2, NT, nxp)
    assert obs.dtype == jnp.float32
    assert bool(jnp.all(jnp.isfinite(obs)))
    print("KERNEL_OK")
</pallas_src>

<mosaic_0001>
module attributes {stable_mosaic.version = 11 : i64} {
  func.func @_gassmann_kernel(%arg0: i32, %arg1: memref<64x128xf32, #tpu.memory_space<vmem>>, %arg2: memref<64x128xf32, #tpu.memory_space<vmem>>, %arg3: memref<64x128xf32, #tpu.memory_space<vmem>>, %arg4: memref<64x128xf32, #tpu.memory_space<vmem>>, %arg5: memref<64x128xf32, #tpu.memory_space<vmem>>, %arg6: memref<64x128xf32, #tpu.memory_space<vmem>>, %arg7: memref<64x128xf32, #tpu.memory_space<vmem>>, %arg8: memref<64x128xf32, #tpu.memory_space<vmem>>, %arg9: memref<64x128xf32, #tpu.memory_space<vmem>>, %arg10: memref<64x128xf32, #tpu.memory_space<vmem>>) attributes {dimension_semantics = [#tpu.dimension_semantics<parallel>], iteration_bounds = array<i64: 1>, scalar_prefetch = 0 : i64, scratch_operands = 0 : i64, tpu.core_type = #tpu.core_type<tc>, window_params = [{transform_indices = @transform_0, window_bounds = array<i64: 64, 128>}, {transform_indices = @transform_1, window_bounds = array<i64: 64, 128>}, {transform_indices = @transform_2, window_bounds = array<i64: 64, 128>}, {transform_indices = @transform_3, window_bounds = array<i64: 64, 128>}, {transform_indices = @transform_4, window_bounds = array<i64: 64, 128>}, {transform_indices = @transform_5, window_bounds = array<i64: 64, 128>}, {transform_indices = @transform_6, window_bounds = array<i64: 64, 128>}, {transform_indices = @transform_7, window_bounds = array<i64: 64, 128>}, {transform_indices = @transform_8, window_bounds = array<i64: 64, 128>}, {transform_indices = @transform_9, window_bounds = array<i64: 64, 128>}]} {
    %c0 = arith.constant 0 : index
    %c0_0 = arith.constant 0 : index
    %0 = vector.load %arg7[%c0, %c0_0] : memref<64x128xf32, #tpu.memory_space<vmem>>, vector<64x128xf32>
    %cst = arith.constant 1.000000e+00 : f32
    %1 = vector.broadcast %cst : f32 to vector<64x128xf32>
    %2 = arith.subf %1, %0 : vector<64x128xf32>
    %c0_1 = arith.constant 0 : index
    %c0_2 = arith.constant 0 : index
    %3 = vector.load %arg1[%c0_1, %c0_2] : memref<64x128xf32, #tpu.memory_space<vmem>>, vector<64x128xf32>
    %4 = arith.mulf %0, %3 : vector<64x128xf32>
    %c0_3 = arith.constant 0 : index
    %c0_4 = arith.constant 0 : index
    %5 = vector.load %arg4[%c0_3, %c0_4] : memref<64x128xf32, #tpu.memory_space<vmem>>, vector<64x128xf32>
    %6 = arith.mulf %2, %5 : vector<64x128xf32>
    %7 = arith.addf %4, %6 : vector<64x128xf32>
    %c0_5 = arith.constant 0 : index
    %c0_6 = arith.constant 0 : index
    %8 = vector.load %arg2[%c0_5, %c0_6] : memref<64x128xf32, #tpu.memory_space<vmem>>, vector<64x128xf32>
    %9 = arith.mulf %0, %8 : vector<64x128xf32>
    %c0_7 = arith.constant 0 : index
    %c0_8 = arith.constant 0 : index
    %10 = vector.load %arg5[%c0_7, %c0_8] : memref<64x128xf32, #tpu.memory_space<vmem>>, vector<64x128xf32>
    %11 = arith.mulf %2, %10 : vector<64x128xf32>
    %12 = arith.addf %9, %11 : vector<64x128xf32>
    %c0_9 = arith.constant 0 : index
    %c0_10 = arith.constant 0 : index
    %13 = vector.load %arg3[%c0_9, %c0_10] : memref<64x128xf32, #tpu.memory_space<vmem>>, vector<64x128xf32>
    %14 = arith.mulf %0, %13 : vector<64x128xf32>
    %c0_11 = arith.constant 0 : index
    %c0_12 = arith.constant 0 : index
    %15 = vector.load %arg6[%c0_11, %c0_12] : memref<64x128xf32, #tpu.memory_space<vmem>>, vector<64x128xf32>
    %16 = arith.mulf %2, %15 : vector<64x128xf32>
    %17 = arith.addf %14, %16 : vector<64x128xf32>
    %cst_13 = arith.constant 9.99999997E-7 : f32
    %cst_14 = arith.constant 0.999998986 : f32
    %18 = vector.broadcast %cst_13 : f32 to vector<64x128xf32>
    %19 = arith.maximumf %18, %7 : vector<64x128xf32>
    %20 = vector.broadcast %cst_14 : f32 to vector<64x128xf32>
    %21 = arith.minimumf %20, %19 : vector<64x128xf32>
    %cst_15 = arith.constant 1.000000e+00 : f32
    %22 = vector.broadcast %cst_15 : f32 to vector<64x128xf32>
    %23 = arith.subf %22, %21 : vector<64x128xf32>
    %cst_16 = arith.constant 1.000000e+03 : f32
    %24 = vector.broadcast %cst_16 : f32 to vector<64x128xf32>
    %25 = arith.mulf %24, %17 : vector<64x128xf32>
    %cst_17 = arith.constant 1.000000e+00 : f32
    %26 = vector.broadcast %cst_17 : f32 to vector<64x128xf32>
    %27 = arith.subf %26, %17 : vector<64x128xf32>
    %cst_18 = arith.constant 1.000000e+02 : f32
    %28 = vector.broadcast %cst_18 : f32 to vector<64x128xf32>
    %29 = arith.mulf %28, %27 : vector<64x128xf32>
    %30 = arith.addf %25, %29 : vector<64x128xf32>
    %cst_19 = arith.constant 2.250000e+09 : f32
    %31 = vector.broadcast %cst_19 : f32 to vector<64x128xf32>
    %32 = arith.mulf %31, %17 : vector<64x128xf32>
    %cst_20 = arith.constant 1.000000e+00 : f32
    %33 = vector.broadcast %cst_20 : f32 to vector<64x128xf32>
    %34 = arith.subf %33, %17 : vector<64x128xf32>
    %cst_21 = arith.constant 4.000000e+07 : f32
    %35 = vector.broadcast %cst_21 : f32 to vector<64x128xf32>
    %36 = arith.mulf %35, %34 : vector<64x128xf32>
    %37 = arith.addf %32, %36 : vector<64x128xf32>
    %cst_22 = arith.constant 2.100000e+10 : f32
    %38 = vector.broadcast %cst_22 : f32 to vector<64x128xf32>
    %39 = arith.mulf %38, %12 : vector<64x128xf32>
    %cst_23 = arith.constant 1.000000e+00 : f32
    %40 = vector.broadcast %cst_23 : f32 to vector<64x128xf32>
    %41 = arith.subf %40, %12 : vector<64x128xf32>
    %cst_24 = arith.constant 3.700000e+10 : f32
    %42 = vector.broadcast %cst_24 : f32 to vector<64x128xf32>
    %43 = arith.mulf %42, %41 : vector<64x128xf32>
    %44 = arith.addf %39, %43 : vector<64x128xf32>
    %cst_25 = arith.constant 1.000000e+10 : f32
    %45 = vector.broadcast %cst_25 : f32 to vector<64x128xf32>
    %46 = arith.mulf %45, %12 : vector<64x128xf32>
    %cst_26 = arith.constant 1.000000e+00 : f32
    %47 = vector.broadcast %cst_26 : f32 to vector<64x128xf32>
    %48 = arith.subf %47, %12 : vector<64x128xf32>
    %cst_27 = arith.constant 4.400000e+10 : f32
    %49 = vector.broadcast %cst_27 : f32 to vector<64x128xf32>
    %50 = arith.mulf %49, %48 : vector<64x128xf32>
    %51 = arith.addf %46, %50 : vector<64x128xf32>
    %cst_28 = arith.constant 2.550000e+03 : f32
    %52 = vector.broadcast %cst_28 : f32 to vector<64x128xf32>
    %53 = arith.mulf %52, %12 : vector<64x128xf32>
    %cst_29 = arith.constant 1.000000e+00 : f32
    %54 = vector.broadcast %cst_29 : f32 to vector<64x128xf32>
    %55 = arith.subf %54, %12 : vector<64x128xf32>
    %cst_30 = arith.constant 2.650000e+03 : f32
    %56 = vector.broadcast %cst_30 : f32 to vector<64x128xf32>
    %57 = arith.mulf %56, %55 : vector<64x128xf32>
    %58 = arith.addf %53, %57 : vector<64x128xf32>
    %59 = tpu.reciprocal %44 {approx = true} : vector<64x128xf32> -> vector<64x128xf32>
    %60 = arith.mulf %44, %59 : vector<64x128xf32>
    %cst_31 = arith.constant 2.000000e+00 : f32
    %61 = vector.broadcast %cst_31 : f32 to vector<64x128xf32>
    %62 = arith.subf %61, %60 : vector<64x128xf32>
    %63 = arith.mulf %59, %62 : vector<64x128xf32>
    %64 = arith.mulf %44, %23 : vector<64x128xf32>
    %cst_32 = arith.constant 2.000000e+01 : f32
    %65 = vector.broadcast %cst_32 : f32 to vector<64x128xf32>
    %66 = arith.mulf %65, %21 : vector<64x128xf32>
    %cst_33 = arith.constant 1.000000e+00 : f32
    %67 = vector.broadcast %cst_33 : f32 to vector<64x128xf32>
    %68 = arith.addf %67, %66 : vector<64x128xf32>
    %69 = tpu.reciprocal %68 {approx = true} : vector<64x128xf32> -> vector<64x128xf32>
    %70 = arith.mulf %68, %69 : vector<64x128xf32>
    %cst_34 = arith.constant 2.000000e+00 : f32
    %71 = vector.broadcast %cst_34 : f32 to vector<64x128xf32>
    %72 = arith.subf %71, %70 : vector<64x128xf32>
    %73 = arith.mulf %69, %72 : vector<64x128xf32>
    %74 = arith.mulf %64, %73 : vector<64x128xf32>
    %75 = arith.mulf %51, %23 : vector<64x128xf32>
    %cst_35 = arith.constant 3.000000e+01 : f32
    %76 = vector.broadcast %cst_35 : f32 to vector<64x128xf32>
    %77 = arith.mulf %76, %21 : vector<64x128xf32>
    %cst_36 = arith.constant 1.000000e+00 : f32
    %78 = vector.broadcast %cst_36 : f32 to vector<64x128xf32>
    %79 = arith.addf %78, %77 : vector<64x128xf32>
    %80 = tpu.reciprocal %79 {approx = true} : vector<64x128xf32> -> vector<64x128xf32>
    %81 = arith.mulf %79, %80 : vector<64x128xf32>
    %cst_37 = arith.constant 2.000000e+00 : f32
    %82 = vector.broadcast %cst_37 : f32 to vector<64x128xf32>
    %83 = arith.subf %82, %81 : vector<64x128xf32>
    %84 = arith.mulf %80, %83 : vector<64x128xf32>
    %85 = arith.mulf %75, %84 : vector<64x128xf32>
    %86 = arith.mulf %74, %63 : vector<64x128xf32>
    %87 = tpu.reciprocal %21 {approx = true} : vector<64x128xf32> -> vector<64x128xf32>
    %88 = arith.mulf %21, %87 : vector<64x128xf32>
    %cst_38 = arith.constant 2.000000e+00 : f32
    %89 = vector.broadcast %cst_38 : f32 to vector<64x128xf32>
    %90 = arith.subf %89, %88 : vector<64x128xf32>
    %91 = arith.mulf %87, %90 : vector<64x128xf32>
    %92 = arith.mulf %23, %91 : vector<64x128xf32>
    %93 = arith.mulf %37, %63 : vector<64x128xf32>
    %94 = arith.mulf %92, %93 : vector<64x128xf32>
    %95 = tpu.reciprocal %23 {approx = true} : vector<64x128xf32> -> vector<64x128xf32>
    %96 = arith.mulf %23, %95 : vector<64x128xf32>
    %cst_39 = arith.constant 2.000000e+00 : f32
    %97 = vector.broadcast %cst_39 : f32 to vector<64x128xf32>
    %98 = arith.subf %97, %96 : vector<64x128xf32>
    %99 = arith.mulf %95, %98 : vector<64x128xf32>
    %100 = arith.mulf %86, %99 : vector<64x128xf32>
    %cst_40 = arith.constant 1.000000e+00 : f32
    %101 = vector.broadcast %cst_40 : f32 to vector<64x128xf32>
    %102 = arith.subf %101, %100 : vector<64x128xf32>
    %103 = arith.mulf %94, %102 : vector<64x128xf32>
    %104 = arith.mulf %21, %74 : vector<64x128xf32>
    %cst_41 = arith.constant 1.000000e+00 : f32
    %105 = vector.broadcast %cst_41 : f32 to vector<64x128xf32>
    %106 = arith.addf %105, %21 : vector<64x128xf32>
    %107 = arith.mulf %106, %86 : vector<64x128xf32>
    %cst_42 = arith.constant 1.000000e+00 : f32
    %108 = vector.broadcast %cst_42 : f32 to vector<64x128xf32>
    %109 = arith.subf %108, %107 : vector<64x128xf32>
    %110 = arith.mulf %109, %37 : vector<64x128xf32>
    %111 = arith.addf %104, %110 : vector<64x128xf32>
    %cst_43 = arith.constant 1.000000e+00 : f32
    %112 = vector.broadcast %cst_43 : f32 to vector<64x128xf32>
    %113 = arith.addf %112, %103 : vector<64x128xf32>
    %114 = arith.mulf %21, %113 : vector<64x128xf32>
    %115 = tpu.reciprocal %114 {approx = true} : vector<64x128xf32> -> vector<64x128xf32>
    %116 = arith.mulf %114, %115 : vector<64x128xf32>
    %cst_44 = arith.constant 2.000000e+00 : f32
    %117 = vector.broadcast %cst_44 : f32 to vector<64x128xf32>
    %118 = arith.subf %117, %116 : vector<64x128xf32>
    %119 = arith.mulf %115, %118 : vector<64x128xf32>
    %120 = arith.mulf %111, %119 : vector<64x128xf32>
    %121 = arith.mulf %30, %21 : vector<64x128xf32>
    %122 = arith.mulf %58, %23 : vector<64x128xf32>
    %123 = arith.addf %121, %122 : vector<64x128xf32>
    %cst_45 = arith.constant 1.250000e+00 : f32
    %124 = vector.broadcast %cst_45 : f32 to vector<64x128xf32>
    %125 = arith.mulf %124, %85 : vector<64x128xf32>
    %126 = arith.subf %120, %125 : vector<64x128xf32>
    %cst_46 = arith.constant 9.99999997E-7 : f32
    %127 = vector.broadcast %cst_46 : f32 to vector<64x128xf32>
    %128 = arith.mulf %126, %127 : vector<64x128xf32>
    %cst_47 = arith.constant 9.99999997E-7 : f32
    %129 = vector.broadcast %cst_47 : f32 to vector<64x128xf32>
    %130 = arith.mulf %85, %129 : vector<64x128xf32>
    %cst_48 = arith.constant 1.000000e-01 : f32
    %131 = vector.broadcast %cst_48 : f32 to vector<64x128xf32>
    %132 = arith.mulf %131, %128 : vector<64x128xf32>
    %c0_49 = arith.constant 0 : index
    %c0_50 = arith.constant 0 : index
    %133 = vector.load %arg8[%c0_49, %c0_50] : memref<64x128xf32, #tpu.memory_space<vmem>>, vector<64x128xf32>
    tpu.vector_store %arg8[%c0_49, %c0_50], %132 {strides = array<i32>} : memref<64x128xf32, #tpu.memory_space<vmem>>, vector<64x128xf32>,
    %cst_51 = arith.constant 2.000000e-01 : f32
    %134 = vector.broadcast %cst_51 : f32 to vector<64x128xf32>
    %135 = arith.mulf %134, %130 : vector<64x128xf32>
    %c0_52 = arith.constant 0 : index
    %c0_53 = arith.constant 0 : index
    %136 = vector.load %arg9[%c0_52, %c0_53] : memref<64x128xf32, #tpu.memory_space<vmem>>, vector<64x128xf32>
    tpu.vector_store %arg9[%c0_52, %c0_53], %135 {strides = array<i32>} : memref<64x128xf32, #tpu.memory_space<vmem>>, vector<64x128xf32>,
    %137 = tpu.reciprocal %123 {approx = true} : vector<64x128xf32> -> vector<64x128xf32>
    %138 = arith.mulf %123, %137 : vector<64x128xf32>
    %cst_54 = arith.constant 2.000000e+00 : f32
    %139 = vector.broadcast %cst_54 : f32 to vector<64x128xf32>
    %140 = arith.subf %139, %138 : vector<64x128xf32>
    %141 = arith.mulf %137, %140 : vector<64x128xf32>
    %cst_55 = arith.constant 1.000000e-01 : f32
    %142 = vector.broadcast %cst_55 : f32 to vector<64x128xf32>
    %143 = arith.mulf %142, %141 : vector<64x128xf32>
    %c0_56 = arith.constant 0 : index
    %c0_57 = arith.constant 0 : index
    %144 = vector.load %arg10[%c0_56, %c0_57] : memref<64x128xf32, #tpu.memory_space<vmem>>, vector<64x128xf32>
    tpu.vector_store %arg10[%c0_56, %c0_57], %143 {strides = array<i32>} : memref<64x128xf32, #tpu.memory_space<vmem>>, vector<64x128xf32>,
    return
  }
  func.func @transform_0(%arg0: i32) -> (i32, i32) {
    %c0_i32 = arith.constant 0 : i32
    %c0_i32_0 = arith.constant 0 : i32
    return %arg0, %c0_i32 : i32, i32
  }
  func.func @transform_1(%arg0: i32) -> (i32, i32) {
    %c0_i32 = arith.constant 0 : i32
    %c0_i32_0 = arith.constant 0 : i32
    return %arg0, %c0_i32 : i32, i32
  }
  func.func @transform_2(%arg0: i32) -> (i32, i32) {
    %c0_i32 = arith.constant 0 : i32
    %c0_i32_0 = arith.constant 0 : i32
    return %arg0, %c0_i32 : i32, i32
  }
  func.func @transform_3(%arg0: i32) -> (i32, i32) {
    %c0_i32 = arith.constant 0 : i32
    %c0_i32_0 = arith.constant 0 : i32
    return %arg0, %c0_i32 : i32, i32
  }
  func.func @transform_4(%arg0: i32) -> (i32, i32) {
    %c0_i32 = arith.constant 0 : i32
    %c0_i32_0 = arith.constant 0 : i32
    return %arg0, %c0_i32 : i32, i32
  }
  func.func @transform_5(%arg0: i32) -> (i32, i32) {
    %c0_i32 = arith.constant 0 : i32
    %c0_i32_0 = arith.constant 0 : i32
    return %arg0, %c0_i32 : i32, i32
  }
  func.func @transform_6(%arg0: i32) -> (i32, i32) {
    %c0_i32 = arith.constant 0 : i32
    %c0_i32_0 = arith.constant 0 : i32
    return %arg0, %c0_i32 : i32, i32
  }
  func.func @transform_7(%arg0: i32) -> (i32, i32) {
    %c0_i32 = arith.constant 0 : i32
    %c0_i32_0 = arith.constant 0 : i32
    return %arg0, %c0_i32 : i32, i32
  }
  func.func @transform_8(%arg0: i32) -> (i32, i32) {
    %c0_i32 = arith.constant 0 : i32
    %c0_i32_0 = arith.constant 0 : i32
    return %arg0, %c0_i32 : i32, i32
  }
  func.func @transform_9(%arg0: i32) -> (i32, i32) {
    %c0_i32 = arith.constant 0 : i32
    %c0_i32_0 = arith.constant 0 : i32
    return %arg0, %c0_i32 : i32, i32
  }
}

</mosaic_0001>

<llo_original>
// kernel: tpu_custom_call.1
$region0: #{tpu_custom_call.1}
  #allocation0 [shape = 'u32[]', space=smem, size = 0x4, offset = 0x4, fixed_abs, tag = 'smem constant byte address 0x4 - core index']
  #allocation1 [shape = 'u32[72,128]{1,0:T(1,128)}', space=vmem, size = 0x9000, scoped, tag = 'internal scratch']
  %s0 = inlined_call_operand.hbm [shape: f32[64,128], index: 0, kind: input, shape index: {}]
  %s1 = inlined_call_operand.hbm [shape: f32[64,128], index: 1, kind: input, shape index: {}]
  %s2 = inlined_call_operand.hbm [shape: f32[64,128], index: 2, kind: input, shape index: {}]
  %s3 = inlined_call_operand.hbm [shape: f32[64,128], index: 3, kind: input, shape index: {}]
  %s4 = inlined_call_operand.hbm [shape: f32[64,128], index: 4, kind: input, shape index: {}]
  %s5 = inlined_call_operand.hbm [shape: f32[64,128], index: 5, kind: input, shape index: {}]
  %s6 = inlined_call_operand.hbm [shape: f32[64,128], index: 6, kind: input, shape index: {}]
  %s7 = inlined_call_operand.hbm [shape: f32[64,128], index: 7, kind: output, shape index: {0}]
  %s8 = inlined_call_operand.hbm [shape: f32[64,128], index: 8, kind: output, shape index: {1}]
  %s9 = inlined_call_operand.hbm [shape: f32[64,128], index: 9, kind: output, shape index: {2}]
  %10 = xla_tuple %s7, %s8, %s9
  %s11 = sld [smem:[#allocation0]]
  $region82: #{tpu_custom_call.1} parent=0
    _
  %s13 = ssub.s32 1, %s11
  %s14 = scalar_select 0, %s13, %s11
  $region1: #{tpu_custom_call.1} parent=0
    #allocation2 [shape = 'u8[32768]{0}', space=vmem, size = 0x8000, scoped, tag = 'input window, operand 0, single buffered']
    #allocation3 [shape = 's32[1]{0}', space=sflag, size = 0x4, scoped, tag = 'scoped memory for tpu_custom_call.1']
    #allocation4 [shape = 's32[1]{0}', space=sflag, size = 0x4, scoped, tag = 'scoped memory for tpu_custom_call.1']
    #allocation5 [shape = 'u8[32768]{0}', space=vmem, size = 0x8000, scoped, tag = 'input window, operand 1, single buffered']
    #allocation6 [shape = 's32[1]{0}', space=sflag, size = 0x4, scoped, tag = 'scoped memory for tpu_custom_call.1']
    #allocation7 [shape = 'u8[32768]{0}', space=vmem, size = 0x8000, scoped, tag = 'input window, operand 2, single buffered']
    #allocation8 [shape = 'u8[32768]{0}', space=vmem, size = 0x8000, scoped, tag = 'input window, operand 3, single buffered']
    #allocation9 [shape = 's32[1]{0}', space=sflag, size = 0x4, scoped, tag = 'scoped memory for tpu_custom_call.1']
    #allocation10 [shape = 'u8[32768]{0}', space=vmem, size = 0x8000, scoped, tag = 'input window, operand 4, single buffered']
    #allocation11 [shape = 'u8[32768]{0}', space=vmem, size = 0x8000, scoped, tag = 'input window, operand 5, single buffered']
    #allocation12 [shape = 's32[1]{0}', space=sflag, size = 0x4, scoped, tag = 'scoped memory for tpu_custom_call.1']
    #allocation13 [shape = 'u8[32768]{0}', space=vmem, size = 0x8000, scoped, tag = 'input window, operand 6, single buffered']
    #allocation14 [shape = 'u8[32768]{0}', space=vmem, size = 0x8000, scoped, tag = 'output window, operand 0, single buffered']
    #allocation15 [shape = 'u8[32768]{0}', space=vmem, size = 0x8000, scoped, tag = 'output window, operand 1, single buffered']
    #allocation16 [shape = 's32[1]{0}', space=sflag, size = 0x4, scoped, tag = 'scoped memory for tpu_custom_call.1']
    #allocation17 [shape = 'u8[32768]{0}', space=vmem, size = 0x8000, scoped, tag = 'output window, operand 2, single buffered']
    %15 = vsyncpa [#allocation3], 0
    %16 = vsyncpa [#allocation6], 0
    %17 = vsyncpa [#allocation9], 0
    %18 = vsyncpa [#allocation12], 0
    %19 = vsyncpa [#allocation4], 0
    %20 = vsyncpa [#allocation16], 0
    // Predicated region
    $region2: #{tpu_custom_call.1} parent=1 // pred_check
      _
    $region3: #{tpu_custom_call.1} parent=1 // pred_check_branch
      %22 = sbr.rel (0) target = $region5
    $region4: #{tpu_custom_call.1} parent=1 // pred_region
      %24 = vsyncadd [#allocation3], 0
      %s25 = sshll.u32 %s0, 4
      %s26 = int_to_ptr.hbm [resolvable:$true] %s25
      %s27 = sshll.u32 [#allocation2], 4
      %s28 = int_to_ptr.vmem [resolvable:$true] %s27
      %33 = dma.hbm_to_vmem [thread:$0]  %s26, 1024, %s28, [#allocation3], 128, 128, 8
    $region5: #{tpu_custom_call.1} parent=1 // pred_fallthru
      _
    // Predicated region
    $region6: #{tpu_custom_call.1} parent=1 // pred_check
      _
    $region7: #{tpu_custom_call.1} parent=1 // pred_check_branch
      %35 = sbr.rel (0) target = $region9
    $region8: #{tpu_custom_call.1} parent=1 // pred_region
      %37 = vsyncadd [#allocation6], 0
      %s38 = sshll.u32 %s1, 4
      %s39 = int_to_ptr.hbm [resolvable:$true] %s38
      %s40 = sshll.u32 [#allocation5], 4
      %s41 = int_to_ptr.vmem [resolvable:$true] %s40
      %46 = dma.hbm_to_vmem [thread:$0]  %s39, 1024, %s41, [#allocation6], 128, 128, 8
    $region9: #{tpu_custom_call.1} parent=1 // pred_fallthru
      _
    // Predicated region
    $region10: #{tpu_custom_call.1} parent=1 // pred_check
      _
    $region11: #{tpu_custom_call.1} parent=1 // pred_check_branch
      %48 = sbr.rel (0) target = $region13
    $region12: #{tpu_custom_call.1} parent=1 // pred_region
      %50 = vsyncadd [#allocation6], 0
      %s51 = sshll.u32 %s2, 4
      %s52 = int_to_ptr.hbm [resolvable:$true] %s51
      %s53 = sshll.u32 [#allocation7], 4
      %s54 = int_to_ptr.vmem [resolvable:$true] %s53
      %59 = dma.hbm_to_vmem [thread:$0]  %s52, 1024, %s54, [#allocation6], 128, 128, 8
    $region13: #{tpu_custom_call.1} parent=1 // pred_fallthru
      _
    // Predicated region
    $region14: #{tpu_custom_call.1} parent=1 // pred_check
      _
    $region15: #{tpu_custom_call.1} parent=1 // pred_check_branch
      %61 = sbr.rel (0) target = $region17
    $region16: #{tpu_custom_call.1} parent=1 // pred_region
      %63 = vsyncadd [#allocation9], 0
      %s64 = sshll.u32 %s3, 4
      %s65 = int_to_ptr.hbm [resolvable:$true] %s64
      %s66 = sshll.u32 [#allocation8], 4
      %s67 = int_to_ptr.vmem [resolvable:$true] %s66
      %72 = dma.hbm_to_vmem [thread:$0]  %s65, 1024, %s67, [#allocation9], 128, 128, 8
    $region17: #{tpu_custom_call.1} parent=1 // pred_fallthru
      _
    // Predicated region
    $region18: #{tpu_custom_call.1} parent=1 // pred_check
      _
    $region19: #{tpu_custom_call.1} parent=1 // pred_check_branch
      %74 = sbr.rel (0) target = $region21
    $region20: #{tpu_custom_call.1} parent=1 // pred_region
      %76 = vsyncadd [#allocation9], 0
      %s77 = sshll.u32 %s4, 4
      %s78 = int_to_ptr.hbm [resolvable:$true] %s77
      %s79 = sshll.u32 [#allocation10], 4
      %s80 = int_to_ptr.vmem [resolvable:$true] %s79
      %85 = dma.hbm_to_vmem [thread:$0]  %s78, 1024, %s80, [#allocation9], 128, 128, 8
    $region21: #{tpu_custom_call.1} parent=1 // pred_fallthru
      _
    // Predicated region
    $region22: #{tpu_custom_call.1} parent=1 // pred_check
      _
    $region23: #{tpu_custom_call.1} parent=1 // pred_check_branch
      %87 = sbr.rel (0) target = $region25
    $region24: #{tpu_custom_call.1} parent=1 // pred_region
      %89 = vsyncadd [#allocation12], 0
      %s90 = sshll.u32 %s5, 4
      %s91 = int_to_ptr.hbm [resolvable:$true] %s90
      %s92 = sshll.u32 [#allocation11], 4
      %s93 = int_to_ptr.vmem [resolvable:$true] %s92
      %98 = dma.hbm_to_vmem [thread:$0]  %s91, 1024, %s93, [#allocation12], 128, 128, 8
    $region25: #{tpu_custom_call.1} parent=1 // pred_fallthru
      _
    // Predicated region
    $region26: #{tpu_custom_call.1} parent=1 // pred_check
      _
    $region27: #{tpu_custom_call.1} parent=1 // pred_check_branch
      %100 = sbr.rel (0) target = $region29
    $region28: #{tpu_custom_call.1} parent=1 // pred_region
      %102 = vsyncadd [#allocation12], 0
      %s103 = sshll.u32 %s6, 4
      %s104 = int_to_ptr.hbm [resolvable:$true] %s103
      %s105 = sshll.u32 [#allocation13], 4
      %s106 = int_to_ptr.vmem [resolvable:$true] %s105
      %111 = dma.hbm_to_vmem [thread:$0]  %s104, 1024, %s106, [#allocation12], 128, 128, 8
    $region29: #{tpu_custom_call.1} parent=1 // pred_fallthru
      _
    // Predicated region
    $region30: #{tpu_custom_call.1} parent=1 // pred_check
      _
    $region31: #{tpu_custom_call.1} parent=1 // pred_check_branch
      %113 = sbr.rel (0) target = $region33
    $region32: #{tpu_custom_call.1} parent=1 // pred_region
      %115 = dma.done [#allocation3], 1024
    $region33: #{tpu_custom_call.1} parent=1 // pred_fallthru
      _
    // Predicated region
    $region34: #{tpu_custom_call.1} parent=1 // pred_check
      _
    $region35: #{tpu_custom_call.1} parent=1 // pred_check_branch
      %117 = sbr.rel (0) target = $region37
    $region36: #{tpu_custom_call.1} parent=1 // pred_region
      %119 = dma.done [#allocation6], 1024
    $region37: #{tpu_custom_call.1} parent=1 // pred_fallthru
      _
    // Predicated region
    $region38: #{tpu_custom_call.1} parent=1 // pred_check
      _
    $region39: #{tpu_custom_call.1} parent=1 // pred_check_branch
      %121 = sbr.rel (0) target = $region41
    $region40: #{tpu_custom_call.1} parent=1 // pred_region
      %123 = dma.done [#allocation6], 1024
    $region41: #{tpu_custom_call.1} parent=1 // pred_fallthru
      _
    // Predicated region
    $region42: #{tpu_custom_call.1} parent=1 // pred_check
      _
    $region43: #{tpu_custom_call.1} parent=1 // pred_check_branch
      %125 = sbr.rel (0) target = $region45
    $region44: #{tpu_custom_call.1} parent=1 // pred_region
      %127 = dma.done [#allocation9], 1024
    $region45: #{tpu_custom_call.1} parent=1 // pred_fallthru
      _
    // Predicated region
    $region46: #{tpu_custom_call.1} parent=1 // pred_check
      _
    $region47: #{tpu_custom_call.1} parent=1 // pred_check_branch
      %129 = sbr.rel (0) target = $region49
    $region48: #{tpu_custom_call.1} parent=1 // pred_region
      %131 = dma.done [#allocation9], 1024
    $region49: #{tpu_custom_call.1} parent=1 // pred_fallthru
      _
    // Predicated region
    $region50: #{tpu_custom_call.1} parent=1 // pred_check
      _
    $region51: #{tpu_custom_call.1} parent=1 // pred_check_branch
      %133 = sbr.rel (0) target = $region53
    $region52: #{tpu_custom_call.1} parent=1 // pred_region
      %135 = dma.done [#allocation12], 1024
    $region53: #{tpu_custom_call.1} parent=1 // pred_fallthru
      _
    // Predicated region
    $region54: #{tpu_custom_call.1} parent=1 // pred_check
      _
    $region55: #{tpu_custom_call.1} parent=1 // pred_check_branch
      %137 = sbr.rel (0) target = $region57
    $region56: #{tpu_custom_call.1} parent=1 // pred_region
      %139 = dma.done [#allocation12], 1024
    $region57: #{tpu_custom_call.1} parent=1 // pred_fallthru
      _
    %v140 = vld [vmem:[#allocation13] sm:$0xff]
    %v141 = vld [vmem:[#allocation13 + $0x8] sm:$0xff]
    %v142 = vld [vmem:[#allocation13 + $0x10] sm:$0xff]
    %v143 = vld [vmem:[#allocation13 + $0x18] sm:$0xff]
    %v144 = vld [vmem:[#allocation13 + $0x20] sm:$0xff]
    %v145 = vld [vmem:[#allocation13 + $0x28] sm:$0xff]
    %v146 = vld [vmem:[#allocation13 + $0x30] sm:$0xff]
    %v147 = vld [vmem:[#allocation13 + $0x38] sm:$0xff]
    %v148 = vsub.f32 1.0, %v140
    %v149 = vsub.f32 1.0, %v141
    %v150 = vsub.f32 1.0, %v142
    %v151 = vsub.f32 1.0, %v143
    %v152 = vsub.f32 1.0, %v144
    %v153 = vsub.f32 1.0, %v145
    %v154 = vsub.f32 1.0, %v146
    %v155 = vsub.f32 1.0, %v147
    %v156 = vld [vmem:[#allocation2] sm:$0xff]
    %v157 = vld [vmem:[#allocation2 + $0x8] sm:$0xff]
    %v158 = vld [vmem:[#allocation2 + $0x10] sm:$0xff]
    %v159 = vld [vmem:[#allocation2 + $0x18] sm:$0xff]
    %v160 = vld [vmem:[#allocation2 + $0x20] sm:$0xff]
    %v161 = vld [vmem:[#allocation2 + $0x28] sm:$0xff]
    %v162 = vld [vmem:[#allocation2 + $0x30] sm:$0xff]
    %v163 = vld [vmem:[#allocation2 + $0x38] sm:$0xff]
    %v164 = vmul.f32 %v140, %v156
    %v165 = vmul.f32 %v141, %v157
    %v166 = vmul.f32 %v142, %v158
    %v167 = vmul.f32 %v143, %v159
    %v168 = vmul.f32 %v144, %v160
    %v169 = vmul.f32 %v145, %v161
    %v170 = vmul.f32 %v146, %v162
    %v171 = vmul.f32 %v147, %v163
    %v172 = vld [vmem:[#allocation8] sm:$0xff]
    %v173 = vld [vmem:[#allocation8 + $0x8] sm:$0xff]
    %v174 = vld [vmem:[#allocation8 + $0x10] sm:$0xff]
    %v175 = vld [vmem:[#allocation8 + $0x18] sm:$0xff]
    %v176 = vld [vmem:[#allocation8 + $0x20] sm:$0xff]
    %v177 = vld [vmem:[#allocation8 + $0x28] sm:$0xff]
    %v178 = vld [vmem:[#allocation8 + $0x30] sm:$0xff]
    %v179 = vld [vmem:[#allocation8 + $0x38] sm:$0xff]
    %v180 = vmul.f32 %v148, %v172
    %v181 = vmul.f32 %v149, %v173
    %v182 = vmul.f32 %v150, %v174
    %v183 = vmul.f32 %v151, %v175
    %v184 = vmul.f32 %v152, %v176
    %v185 = vmul.f32 %v153, %v177
    %v186 = vmul.f32 %v154, %v178
    %v187 = vmul.f32 %v155, %v179
    %v188 = vadd.f32 %v164, %v180
    %v189 = vadd.f32 %v165, %v181
    %v190 = vadd.f32 %v166, %v182
    %v191 = vadd.f32 %v167, %v183
    %v192 = vadd.f32 %v168, %v184
    %v193 = vadd.f32 %v169, %v185
    %v194 = vadd.f32 %v170, %v186
    %v195 = vadd.f32 %v171, %v187
    %v196 = vld [vmem:[#allocation5] sm:$0xff]
    %v197 = vld [vmem:[#allocation5 + $0x8] sm:$0xff]
    %v198 = vld [vmem:[#allocation5 + $0x10] sm:$0xff]
    %v199 = vld [vmem:[#allocation5 + $0x18] sm:$0xff]
    %v200 = vld [vmem:[#allocation5 + $0x20] sm:$0xff]
    %v201 = vld [vmem:[#allocation5 + $0x28] sm:$0xff]
    %v202 = vld [vmem:[#allocation5 + $0x30] sm:$0xff]
    %v203 = vld [vmem:[#allocation5 + $0x38] sm:$0xff]
    %v204 = vmul.f32 %v140, %v196
    %v205 = vmul.f32 %v141, %v197
    %v206 = vmul.f32 %v142, %v198
    %v207 = vmul.f32 %v143, %v199
    %v208 = vmul.f32 %v144, %v200
    %v209 = vmul.f32 %v145, %v201
    %v210 = vmul.f32 %v146, %v202
    %v211 = vmul.f32 %v147, %v203
    %v212 = vld [vmem:[#allocation10] sm:$0xff]
    %v213 = vld [vmem:[#allocation10 + $0x8] sm:$0xff]
    %v214 = vld [vmem:[#allocation10 + $0x10] sm:$0xff]
    %v215 = vld [vmem:[#allocation10 + $0x18] sm:$0xff]
    %v216 = vld [vmem:[#allocation10 + $0x20] sm:$0xff]
    %v217 = vld [vmem:[#allocation10 + $0x28] sm:$0xff]
    %v218 = vld [vmem:[#allocation10 + $0x30] sm:$0xff]
    %v219 = vld [vmem:[#allocation10 + $0x38] sm:$0xff]
    %v220 = vmul.f32 %v148, %v212
    %v221 = vmul.f32 %v149, %v213
    %v222 = vmul.f32 %v150, %v214
    %v223 = vmul.f32 %v151, %v215
    %v224 = vmul.f32 %v152, %v216
    %v225 = vmul.f32 %v153, %v217
    %v226 = vmul.f32 %v154, %v218
    %v227 = vmul.f32 %v155, %v219
    %v228 = vadd.f32 %v204, %v220
    %v229 = vadd.f32 %v205, %v221
    %v230 = vadd.f32 %v206, %v222
    %v231 = vadd.f32 %v207, %v223
    %v232 = vadd.f32 %v208, %v224
    %v233 = vadd.f32 %v209, %v225
    %v234 = vadd.f32 %v210, %v226
    %v235 = vadd.f32 %v211, %v227
    %v236 = vld [vmem:[#allocation7] sm:$0xff]
    %v237 = vld [vmem:[#allocation7 + $0x8] sm:$0xff]
    %v238 = vld [vmem:[#allocation7 + $0x10] sm:$0xff]
    %v239 = vld [vmem:[#allocation7 + $0x18] sm:$0xff]
    %v240 = vld [vmem:[#allocation7 + $0x20] sm:$0xff]
    %v241 = vld [vmem:[#allocation7 + $0x28] sm:$0xff]
    %v242 = vld [vmem:[#allocation7 + $0x30] sm:$0xff]
    %v243 = vld [vmem:[#allocation7 + $0x38] sm:$0xff]
    %v244 = vmul.f32 %v140, %v236
    %v245 = vmul.f32 %v141, %v237
    %v246 = vmul.f32 %v142, %v238
    %v247 = vmul.f32 %v143, %v239
    %v248 = vmul.f32 %v144, %v240
    %v249 = vmul.f32 %v145, %v241
    %v250 = vmul.f32 %v146, %v242
    %v251 = vmul.f32 %v147, %v243
    %v252 = vld [vmem:[#allocation11] sm:$0xff]
    %v253 = vld [vmem:[#allocation11 + $0x8] sm:$0xff]
    %v254 = vld [vmem:[#allocation11 + $0x10] sm:$0xff]
    %v255 = vld [vmem:[#allocation11 + $0x18] sm:$0xff]
    %v256 = vld [vmem:[#allocation11 + $0x20] sm:$0xff]
    %v257 = vld [vmem:[#allocation11 + $0x28] sm:$0xff]
    %v258 = vld [vmem:[#allocation11 + $0x30] sm:$0xff]
    %v259 = vld [vmem:[#allocation11 + $0x38] sm:$0xff]
    %v260 = vmul.f32 %v148, %v252
    %v261 = vmul.f32 %v149, %v253
    %v262 = vmul.f32 %v150, %v254
    %v263 = vmul.f32 %v151, %v255
    %v264 = vmul.f32 %v152, %v256
    %v265 = vmul.f32 %v153, %v257
    %v266 = vmul.f32 %v154, %v258
    %v267 = vmul.f32 %v155, %v259
    %v268 = vadd.f32 %v244, %v260
    %v269 = vadd.f32 %v245, %v261
    %v270 = vadd.f32 %v246, %v262
    %v271 = vadd.f32 %v247, %v263
    %v272 = vadd.f32 %v248, %v264
    %v273 = vadd.f32 %v249, %v265
    %v274 = vadd.f32 %v250, %v266
    %v275 = vadd.f32 %v251, %v267
    %v276 = vmax.f32 %v188, 1e-06
    %v277 = vmax.f32 %v189, 1e-06
    %v278 = vmax.f32 %v190, 1e-06
    %v279 = vmax.f32 %v191, 1e-06
    %v280 = vmax.f32 %v192, 1e-06
    %v281 = vmax.f32 %v193, 1e-06
    %v282 = vmax.f32 %v194, 1e-06
    %v283 = vmax.f32 %v195, 1e-06
    %v284 = vmin.f32 %v276, 0.999999
    %v285 = vmin.f32 %v277, 0.999999
    %v286 = vmin.f32 %v278, 0.999999
    %v287 = vmin.f32 %v279, 0.999999
    %v288 = vmin.f32 %v280, 0.999999
    %v289 = vmin.f32 %v281, 0.999999
    %v290 = vmin.f32 %v282, 0.999999
    %v291 = vmin.f32 %v283, 0.999999
    %v292 = vsub.f32 1.0, %v284
    %v293 = vsub.f32 1.0, %v285
    %v294 = vsub.f32 1.0, %v286
    %v295 = vsub.f32 1.0, %v287
    %v296 = vsub.f32 1.0, %v288
    %v297 = vsub.f32 1.0, %v289
    %v298 = vsub.f32 1.0, %v290
    %v299 = vsub.f32 1.0, %v291
    %v300 = vmul.f32 %v268, 1000.0
    %v301 = vmul.f32 %v269, 1000.0
    %v302 = vmul.f32 %v270, 1000.0
    %v303 = vmul.f32 %v271, 1000.0
    %v304 = vmul.f32 %v272, 1000.0
    %v305 = vmul.f32 %v273, 1000.0
    %v306 = vmul.f32 %v274, 1000.0
    %v307 = vmul.f32 %v275, 1000.0
    %v308 = vsub.f32 1.0, %v268
    %v309 = vsub.f32 1.0, %v269
    %v310 = vsub.f32 1.0, %v270
    %v311 = vsub.f32 1.0, %v271
    %v312 = vsub.f32 1.0, %v272
    %v313 = vsub.f32 1.0, %v273
    %v314 = vsub.f32 1.0, %v274
    %v315 = vsub.f32 1.0, %v275
    %v316 = vmul.f32 %v308, 100.0
    %v317 = vmul.f32 %v309, 100.0
    %v318 = vmul.f32 %v310, 100.0
    %v319 = vmul.f32 %v311, 100.0
    %v320 = vmul.f32 %v312, 100.0
    %v321 = vmul.f32 %v313, 100.0
    %v322 = vmul.f32 %v314, 100.0
    %v323 = vmul.f32 %v315, 100.0
    %v324 = vadd.f32 %v300, %v316
    %v325 = vadd.f32 %v301, %v317
    %v326 = vadd.f32 %v302, %v318
    %v327 = vadd.f32 %v303, %v319
    %v328 = vadd.f32 %v304, %v320
    %v329 = vadd.f32 %v305, %v321
    %v330 = vadd.f32 %v306, %v322
    %v331 = vadd.f32 %v307, %v323
    %v332 = vmul.f32 %v268, 2.2499999e+09
    %v333 = vmul.f32 %v269, 2.2499999e+09
    %v334 = vmul.f32 %v270, 2.2499999e+09
    %v335 = vmul.f32 %v271, 2.2499999e+09
    %v336 = vmul.f32 %v272, 2.2499999e+09
    %v337 = vmul.f32 %v273, 2.2499999e+09
    %v338 = vmul.f32 %v274, 2.2499999e+09
    %v339 = vmul.f32 %v275, 2.2499999e+09
    %v340 = vmul.f32 %v308, 40000000.0
    %v341 = vmul.f32 %v309, 40000000.0
    %v342 = vmul.f32 %v310, 40000000.0
    %v343 = vmul.f32 %v311, 40000000.0
    %v344 = vmul.f32 %v312, 40000000.0
    %v345 = vmul.f32 %v313, 40000000.0
    %v346 = vmul.f32 %v314, 40000000.0
    %v347 = vmul.f32 %v315, 40000000.0
    %v348 = vadd.f32 %v332, %v340
    %v349 = vadd.f32 %v333, %v341
    %v350 = vadd.f32 %v334, %v342
    %v351 = vadd.f32 %v335, %v343
    %v352 = vadd.f32 %v336, %v344
    %v353 = vadd.f32 %v337, %v345
    %v354 = vadd.f32 %v338, %v346
    %v355 = vadd.f32 %v339, %v347
    %v356 = vmul.f32 %v228, 2.1e+10
    %v357 = vmul.f32 %v229, 2.1e+10
    %v358 = vmul.f32 %v230, 2.1e+10
    %v359 = vmul.f32 %v231, 2.1e+10
    %v360 = vmul.f32 %v232, 2.1e+10
    %v361 = vmul.f32 %v233, 2.1e+10
    %v362 = vmul.f32 %v234, 2.1e+10
    %v363 = vmul.f32 %v235, 2.1e+10
    %v364 = vsub.f32 1.0, %v228
    %v365 = vsub.f32 1.0, %v229
    %v366 = vsub.f32 1.0, %v230
    %v367 = vsub.f32 1.0, %v231
    %v368 = vsub.f32 1.0, %v232
    %v369 = vsub.f32 1.0, %v233
    %v370 = vsub.f32 1.0, %v234
    %v371 = vsub.f32 1.0, %v235
    %v372 = vmul.f32 %v364, 3.7e+10
    %v373 = vmul.f32 %v365, 3.7e+10
    %v374 = vmul.f32 %v366, 3.7e+10
    %v375 = vmul.f32 %v367, 3.7e+10
    %v376 = vmul.f32 %v368, 3.7e+10
    %v377 = vmul.f32 %v369, 3.7e+10
    %v378 = vmul.f32 %v370, 3.7e+10
    %v379 = vmul.f32 %v371, 3.7e+10
    %v380 = vadd.f32 %v356, %v372
    %v381 = vadd.f32 %v357, %v373
    %v382 = vadd.f32 %v358, %v374
    %v383 = vadd.f32 %v359, %v375
    %v384 = vadd.f32 %v360, %v376
    %v385 = vadd.f32 %v361, %v377
    %v386 = vadd.f32 %v362, %v378
    %v387 = vadd.f32 %v363, %v379
    %v388 = vmul.f32 %v228, 1e+10
    %v389 = vmul.f32 %v229, 1e+10
    %v390 = vmul.f32 %v230, 1e+10
    %v391 = vmul.f32 %v231, 1e+10
    %v392 = vmul.f32 %v232, 1e+10
    %v393 = vmul.f32 %v233, 1e+10
    %v394 = vmul.f32 %v234, 1e+10
    %v395 = vmul.f32 %v235, 1e+10
    %v396 = vmul.f32 %v364, 4.4000002e+10
    %v397 = vmul.f32 %v365, 4.4000002e+10
    %v398 = vmul.f32 %v366, 4.4000002e+10
    %v399 = vmul.f32 %v367, 4.4000002e+10
    %v400 = vmul.f32 %v368, 4.4000002e+10
    %v401 = vmul.f32 %v369, 4.4000002e+10
    %v402 = vmul.f32 %v370, 4.4000002e+10
    %v403 = vmul.f32 %v371, 4.4000002e+10
    %v404 = vadd.f32 %v388, %v396
    %v405 = vadd.f32 %v389, %v397
    %v406 = vadd.f32 %v390, %v398
    %v407 = vadd.f32 %v391, %v399
    %v408 = vadd.f32 %v392, %v400
    %v409 = vadd.f32 %v393, %v401
    %v410 = vadd.f32 %v394, %v402
    %v411 = vadd.f32 %v395, %v403
    %v412 = vmul.f32 %v228, 2550.0
    %v413 = vmul.f32 %v229, 2550.0
    %v414 = vmul.f32 %v230, 2550.0
    %v415 = vmul.f32 %v231, 2550.0
    %v416 = vmul.f32 %v232, 2550.0
    %v417 = vmul.f32 %v233, 2550.0
    %v418 = vmul.f32 %v234, 2550.0
    %v419 = vmul.f32 %v235, 2550.0
    %v420 = vmul.f32 %v364, 2650.0
    %v421 = vmul.f32 %v365, 2650.0
    %v422 = vmul.f32 %v366, 2650.0
    %v423 = vmul.f32 %v367, 2650.0
    %v424 = vmul.f32 %v368, 2650.0
    %v425 = vmul.f32 %v369, 2650.0
    %v426 = vmul.f32 %v370, 2650.0
    %v427 = vmul.f32 %v371, 2650.0
    %v428 = vadd.f32 %v412, %v420
    %v429 = vadd.f32 %v413, %v421
    %v430 = vadd.f32 %v414, %v422
    %v431 = vadd.f32 %v415, %v423
    %v432 = vadd.f32 %v416, %v424
    %v433 = vadd.f32 %v417, %v425
    %v434 = vadd.f32 %v418, %v426
    %v435 = vadd.f32 %v419, %v427
    %v436 = vrcp.pop %v380
    %v437 = vrcp.pop %v381
    %v438 = vrcp.pop %v382
    %v439 = vrcp.pop %v383
    %v440 = vrcp.pop %v384
    %v441 = vrcp.pop %v385
    %v442 = vrcp.pop %v386
    %v443 = vrcp.pop %v387
    %v444 = vmul.f32 %v380, %v436
    %v445 = vmul.f32 %v381, %v437
    %v446 = vmul.f32 %v382, %v438
    %v447 = vmul.f32 %v383, %v439
    %v448 = vmul.f32 %v384, %v440
    %v449 = vmul.f32 %v385, %v441
    %v450 = vmul.f32 %v386, %v442
    %v451 = vmul.f32 %v387, %v443
    %v452 = vsub.f32 2.0, %v444
    %v453 = vsub.f32 2.0, %v445
    %v454 = vsub.f32 2.0, %v446
    %v455 = vsub.f32 2.0, %v447
    %v456 = vsub.f32 2.0, %v448
    %v457 = vsub.f32 2.0, %v449
    %v458 = vsub.f32 2.0, %v450
    %v459 = vsub.f32 2.0, %v451
    %v460 = vmul.f32 %v436, %v452
    %v461 = vmul.f32 %v437, %v453
    %v462 = vmul.f32 %v438, %v454
    %v463 = vmul.f32 %v439, %v455
    %v464 = vmul.f32 %v440, %v456
    %v465 = vmul.f32 %v441, %v457
    %v466 = vmul.f32 %v442, %v458
    %v467 = vmul.f32 %v443, %v459
    %v468 = vmul.f32 %v380, %v292
    %v469 = vmul.f32 %v381, %v293
    %v470 = vmul.f32 %v382, %v294
    %v471 = vmul.f32 %v383, %v295
    %v472 = vmul.f32 %v384, %v296
    %v473 = vmul.f32 %v385, %v297
    %v474 = vmul.f32 %v386, %v298
    %v475 = vmul.f32 %v387, %v299
    %v476 = vmul.f32 %v284, 20.0
    %v477 = vmul.f32 %v285, 20.0
    %v478 = vmul.f32 %v286, 20.0
    %v479 = vmul.f32 %v287, 20.0
    %v480 = vmul.f32 %v288, 20.0
    %v481 = vmul.f32 %v289, 20.0
    %v482 = vmul.f32 %v290, 20.0
    %v483 = vmul.f32 %v291, 20.0
    %v484 = vadd.f32 %v476, 1.0
    %v485 = vadd.f32 %v477, 1.0
    %v486 = vadd.f32 %v478, 1.0
    %v487 = vadd.f32 %v479, 1.0
    %v488 = vadd.f32 %v480, 1.0
    %v489 = vadd.f32 %v481, 1.0
    %v490 = vadd.f32 %v482, 1.0
    %v491 = vadd.f32 %v483, 1.0
    %v492 = vrcp.pop %v484
    %v493 = vrcp.pop %v485
    %v494 = vrcp.pop %v486
    %v495 = vrcp.pop %v487
    %v496 = vrcp.pop %v488
    %v497 = vrcp.pop %v489
    %v498 = vrcp.pop %v490
    %v499 = vrcp.pop %v491
    %v500 = vmul.f32 %v484, %v492
    %v501 = vmul.f32 %v485, %v493
    %v502 = vmul.f32 %v486, %v494
    %v503 = vmul.f32 %v487, %v495
    %v504 = vmul.f32 %v488, %v496
    %v505 = vmul.f32 %v489, %v497
    %v506 = vmul.f32 %v490, %v498
    %v507 = vmul.f32 %v491, %v499
    %v508 = vsub.f32 2.0, %v500
    %v509 = vsub.f32 2.0, %v501
    %v510 = vsub.f32 2.0, %v502
    %v511 = vsub.f32 2.0, %v503
    %v512 = vsub.f32 2.0, %v504
    %v513 = vsub.f32 2.0, %v505
    %v514 = vsub.f32 2.0, %v506
    %v515 = vsub.f32 2.0, %v507
    %v516 = vmul.f32 %v492, %v508
    %v517 = vmul.f32 %v493, %v509
    %v518 = vmul.f32 %v494, %v510
    %v519 = vmul.f32 %v495, %v511
    %v520 = vmul.f32 %v496, %v512
    %v521 = vmul.f32 %v497, %v513
    %v522 = vmul.f32 %v498, %v514
    %v523 = vmul.f32 %v499, %v515
    %v524 = vmul.f32 %v468, %v516
    %v525 = vmul.f32 %v469, %v517
    %v526 = vmul.f32 %v470, %v518
    %v527 = vmul.f32 %v471, %v519
    %v528 = vmul.f32 %v472, %v520
    %v529 = vmul.f32 %v473, %v521
    %v530 = vmul.f32 %v474, %v522
    %v531 = vmul.f32 %v475, %v523
    %v532 = vmul.f32 %v404, %v292
    %v533 = vmul.f32 %v405, %v293
    %v534 = vmul.f32 %v406, %v294
    %v535 = vmul.f32 %v407, %v295
    %v536 = vmul.f32 %v408, %v296
    %v537 = vmul.f32 %v409, %v297
    %v538 = vmul.f32 %v410, %v298
    %v539 = vmul.f32 %v411, %v299
    %v540 = vmul.f32 %v284, 30.0
    %v541 = vmul.f32 %v285, 30.0
    %v542 = vmul.f32 %v286, 30.0
    %v543 = vmul.f32 %v287, 30.0
    %v544 = vmul.f32 %v288, 30.0
    %v545 = vmul.f32 %v289, 30.0
    %v546 = vmul.f32 %v290, 30.0
    %v547 = vmul.f32 %v291, 30.0
    %v548 = vadd.f32 %v540, 1.0
    %v549 = vadd.f32 %v541, 1.0
    %v550 = vadd.f32 %v542, 1.0
    %v551 = vadd.f32 %v543, 1.0
    %v552 = vadd.f32 %v544, 1.0
    %v553 = vadd.f32 %v545, 1.0
    %v554 = vadd.f32 %v546, 1.0
    %v555 = vadd.f32 %v547, 1.0
    %v556 = vrcp.pop %v548
    %v557 = vrcp.pop %v549
    %v558 = vrcp.pop %v550
    %v559 = vrcp.pop %v551
    %v560 = vrcp.pop %v552
    %v561 = vrcp.pop %v553
    %v562 = vrcp.pop %v554
    %v563 = vrcp.pop %v555
    %v564 = vmul.f32 %v548, %v556
    %v565 = vmul.f32 %v549, %v557
    %v566 = vmul.f32 %v550, %v558
    %v567 = vmul.f32 %v551, %v559
    %v568 = vmul.f32 %v552, %v560
    %v569 = vmul.f32 %v553, %v561
    %v570 = vmul.f32 %v554, %v562
    %v571 = vmul.f32 %v555, %v563
    %v572 = vsub.f32 2.0, %v564
    %v573 = vsub.f32 2.0, %v565
    %v574 = vsub.f32 2.0, %v566
    %v575 = vsub.f32 2.0, %v567
    %v576 = vsub.f32 2.0, %v568
    %v577 = vsub.f32 2.0, %v569
    %v578 = vsub.f32 2.0, %v570
    %v579 = vsub.f32 2.0, %v571
    %v580 = vmul.f32 %v556, %v572
    %v581 = vmul.f32 %v557, %v573
    %v582 = vmul.f32 %v558, %v574
    %v583 = vmul.f32 %v559, %v575
    %v584 = vmul.f32 %v560, %v576
    %v585 = vmul.f32 %v561, %v577
    %v586 = vmul.f32 %v562, %v578
    %v587 = vmul.f32 %v563, %v579
    %v588 = vmul.f32 %v532, %v580
    %v589 = vmul.f32 %v533, %v581
    %v590 = vmul.f32 %v534, %v582
    %v591 = vmul.f32 %v535, %v583
    %v592 = vmul.f32 %v536, %v584
    %v593 = vmul.f32 %v537, %v585
    %v594 = vmul.f32 %v538, %v586
    %v595 = vmul.f32 %v539, %v587
    %v596 = vmul.f32 %v524, %v460
    %v597 = vmul.f32 %v525, %v461
    %v598 = vmul.f32 %v526, %v462
    %v599 = vmul.f32 %v527, %v463
    %v600 = vmul.f32 %v528, %v464
    %v601 = vmul.f32 %v529, %v465
    %v602 = vmul.f32 %v530, %v466
    %v603 = vmul.f32 %v531, %v467
    %v604 = vrcp.pop %v284
    %v605 = vrcp.pop %v285
    %v606 = vrcp.pop %v286
    %v607 = vrcp.pop %v287
    %v608 = vrcp.pop %v288
    %v609 = vrcp.pop %v289
    %v610 = vrcp.pop %v290
    %v611 = vrcp.pop %v291
    %v612 = vmul.f32 %v284, %v604
    %v613 = vmul.f32 %v285, %v605
    %v614 = vmul.f32 %v286, %v606
    %v615 = vmul.f32 %v287, %v607
    %v616 = vmul.f32 %v288, %v608
    %v617 = vmul.f32 %v289, %v609
    %v618 = vmul.f32 %v290, %v610
    %v619 = vmul.f32 %v291, %v611
    %v620 = vsub.f32 2.0, %v612
    %v621 = vsub.f32 2.0, %v613
    %v622 = vsub.f32 2.0, %v614
    %v623 = vsub.f32 2.0, %v615
    %v624 = vsub.f32 2.0, %v616
    %v625 = vsub.f32 2.0, %v617
    %v626 = vsub.f32 2.0, %v618
    %v627 = vsub.f32 2.0, %v619
    %v628 = vmul.f32 %v604, %v620
    %v629 = vmul.f32 %v605, %v621
    %v630 = vmul.f32 %v606, %v622
    %v631 = vmul.f32 %v607, %v623
    %v632 = vmul.f32 %v608, %v624
    %v633 = vmul.f32 %v609, %v625
    %v634 = vmul.f32 %v610, %v626
    %v635 = vmul.f32 %v611, %v627
    %v636 = vmul.f32 %v292, %v628
    %v637 = vmul.f32 %v293, %v629
    %v638 = vmul.f32 %v294, %v630
    %v639 = vmul.f32 %v295, %v631
    %v640 = vmul.f32 %v296, %v632
    %v641 = vmul.f32 %v297, %v633
    %v642 = vmul.f32 %v298, %v634
    %v643 = vmul.f32 %v299, %v635
    %v644 = vmul.f32 %v348, %v460
    %v645 = vmul.f32 %v349, %v461
    %v646 = vmul.f32 %v350, %v462
    %v647 = vmul.f32 %v351, %v463
    %v648 = vmul.f32 %v352, %v464
    %v649 = vmul.f32 %v353, %v465
    %v650 = vmul.f32 %v354, %v466
    %v651 = vmul.f32 %v355, %v467
    %v652 = vmul.f32 %v636, %v644
    %v653 = vmul.f32 %v637, %v645
    %v654 = vmul.f32 %v638, %v646
    %v655 = vmul.f32 %v639, %v647
    %v656 = vmul.f32 %v640, %v648
    %v657 = vmul.f32 %v641, %v649
    %v658 = vmul.f32 %v642, %v650
    %v659 = vmul.f32 %v643, %v651
    %v660 = vrcp.pop %v292
    %v661 = vrcp.pop %v293
    %v662 = vrcp.pop %v294
    %v663 = vrcp.pop %v295
    %v664 = vrcp.pop %v296
    %v665 = vrcp.pop %v297
    %v666 = vrcp.pop %v298
    %v667 = vrcp.pop %v299
    %v668 = vmul.f32 %v292, %v660
    %v669 = vmul.f32 %v293, %v661
    %v670 = vmul.f32 %v294, %v662
    %v671 = vmul.f32 %v295, %v663
    %v672 = vmul.f32 %v296, %v664
    %v673 = vmul.f32 %v297, %v665
    %v674 = vmul.f32 %v298, %v666
    %v675 = vmul.f32 %v299, %v667
    %v676 = vsub.f32 2.0, %v668
    %v677 = vsub.f32 2.0, %v669
    %v678 = vsub.f32 2.0, %v670
    %v679 = vsub.f32 2.0, %v671
    %v680 = vsub.f32 2.0, %v672
    %v681 = vsub.f32 2.0, %v673
    %v682 = vsub.f32 2.0, %v674
    %v683 = vsub.f32 2.0, %v675
    %v684 = vmul.f32 %v660, %v676
    %v685 = vmul.f32 %v661, %v677
    %v686 = vmul.f32 %v662, %v678
    %v687 = vmul.f32 %v663, %v679
    %v688 = vmul.f32 %v664, %v680
    %v689 = vmul.f32 %v665, %v681
    %v690 = vmul.f32 %v666, %v682
    %v691 = vmul.f32 %v667, %v683
    %v692 = vmul.f32 %v596, %v684
    %v693 = vmul.f32 %v597, %v685
    %v694 = vmul.f32 %v598, %v686
    %v695 = vmul.f32 %v599, %v687
    %v696 = vmul.f32 %v600, %v688
    %v697 = vmul.f32 %v601, %v689
    %v698 = vmul.f32 %v602, %v690
    %v699 = vmul.f32 %v603, %v691
    %v700 = vsub.f32 1.0, %v692
    %v701 = vsub.f32 1.0, %v693
    %v702 = vsub.f32 1.0, %v694
    %v703 = vsub.f32 1.0, %v695
    %v704 = vsub.f32 1.0, %v696
    %v705 = vsub.f32 1.0, %v697
    %v706 = vsub.f32 1.0, %v698
    %v707 = vsub.f32 1.0, %v699
    %v708 = vmul.f32 %v652, %v700
    %v709 = vmul.f32 %v653, %v701
    %v710 = vmul.f32 %v654, %v702
    %v711 = vmul.f32 %v655, %v703
    %v712 = vmul.f32 %v656, %v704
    %v713 = vmul.f32 %v657, %v705
    %v714 = vmul.f32 %v658, %v706
    %v715 = vmul.f32 %v659, %v707
    %v716 = vmul.f32 %v284, %v524
    %v717 = vmul.f32 %v285, %v525
    %v718 = vmul.f32 %v286, %v526
    %v719 = vmul.f32 %v287, %v527
    %v720 = vmul.f32 %v288, %v528
    %v721 = vmul.f32 %v289, %v529
    %v722 = vmul.f32 %v290, %v530
    %v723 = vmul.f32 %v291, %v531
    %v724 = vadd.f32 %v284, 1.0
    %v725 = vadd.f32 %v285, 1.0
    %v726 = vadd.f32 %v286, 1.0
    %v727 = vadd.f32 %v287, 1.0
    %v728 = vadd.f32 %v288, 1.0
    %v729 = vadd.f32 %v289, 1.0
    %v730 = vadd.f32 %v290, 1.0
    %v731 = vadd.f32 %v291, 1.0
    %v732 = vmul.f32 %v724, %v596
    %v733 = vmul.f32 %v725, %v597
    %v734 = vmul.f32 %v726, %v598
    %v735 = vmul.f32 %v727, %v599
    %v736 = vmul.f32 %v728, %v600
    %v737 = vmul.f32 %v729, %v601
    %v738 = vmul.f32 %v730, %v602
    %v739 = vmul.f32 %v731, %v603
    %v740 = vsub.f32 1.0, %v732
    %v741 = vsub.f32 1.0, %v733
    %v742 = vsub.f32 1.0, %v734
    %v743 = vsub.f32 1.0, %v735
    %v744 = vsub.f32 1.0, %v736
    %v745 = vsub.f32 1.0, %v737
    %v746 = vsub.f32 1.0, %v738
    %v747 = vsub.f32 1.0, %v739
    %v748 = vmul.f32 %v740, %v348
    %v749 = vmul.f32 %v741, %v349
    %v750 = vmul.f32 %v742, %v350
    %v751 = vmul.f32 %v743, %v351
    %v752 = vmul.f32 %v744, %v352
    %v753 = vmul.f32 %v745, %v353
    %v754 = vmul.f32 %v746, %v354
    %v755 = vmul.f32 %v747, %v355
    %v756 = vadd.f32 %v716, %v748
    %v757 = vadd.f32 %v717, %v749
    %v758 = vadd.f32 %v718, %v750
    %v759 = vadd.f32 %v719, %v751
    %v760 = vadd.f32 %v720, %v752
    %v761 = vadd.f32 %v721, %v753
    %v762 = vadd.f32 %v722, %v754
    %v763 = vadd.f32 %v723, %v755
    %v764 = vadd.f32 %v708, 1.0
    %v765 = vadd.f32 %v709, 1.0
    %v766 = vadd.f32 %v710, 1.0
    %v767 = vadd.f32 %v711, 1.0
    %v768 = vadd.f32 %v712, 1.0
    %v769 = vadd.f32 %v713, 1.0
    %v770 = vadd.f32 %v714, 1.0
    %v771 = vadd.f32 %v715, 1.0
    %v772 = vmul.f32 %v284, %v764
    %v773 = vmul.f32 %v285, %v765
    %v774 = vmul.f32 %v286, %v766
    %v775 = vmul.f32 %v287, %v767
    %v776 = vmul.f32 %v288, %v768
    %v777 = vmul.f32 %v289, %v769
    %v778 = vmul.f32 %v290, %v770
    %v779 = vmul.f32 %v291, %v771
    %v780 = vrcp.pop %v772
    %v781 = vrcp.pop %v773
    %v782 = vrcp.pop %v774
    %v783 = vrcp.pop %v775
    %v784 = vrcp.pop %v776
    %v785 = vrcp.pop %v777
    %v786 = vrcp.pop %v778
    %v787 = vrcp.pop %v779
    %v788 = vmul.f32 %v772, %v780
    %v789 = vmul.f32 %v773, %v781
    %v790 = vmul.f32 %v774, %v782
    %v791 = vmul.f32 %v775, %v783
    %v792 = vmul.f32 %v776, %v784
    %v793 = vmul.f32 %v777, %v785
    %v794 = vmul.f32 %v778, %v786
    %v795 = vmul.f32 %v779, %v787
    %v796 = vsub.f32 2.0, %v788
    %v797 = vsub.f32 2.0, %v789
    %v798 = vsub.f32 2.0, %v790
    %v799 = vsub.f32 2.0, %v791
    %v800 = vsub.f32 2.0, %v792
    %v801 = vsub.f32 2.0, %v793
    %v802 = vsub.f32 2.0, %v794
    %v803 = vsub.f32 2.0, %v795
    %v804 = vmul.f32 %v780, %v796
    %v805 = vmul.f32 %v781, %v797
    %v806 = vmul.f32 %v782, %v798
    %v807 = vmul.f32 %v783, %v799
    %v808 = vmul.f32 %v784, %v800
    %v809 = vmul.f32 %v785, %v801
    %v810 = vmul.f32 %v786, %v802
    %v811 = vmul.f32 %v787, %v803
    %v812 = vmul.f32 %v756, %v804
    %v813 = vmul.f32 %v757, %v805
    %v814 = vmul.f32 %v758, %v806
    %v815 = vmul.f32 %v759, %v807
    %v816 = vmul.f32 %v760, %v808
    %v817 = vmul.f32 %v761, %v809
    %v818 = vmul.f32 %v762, %v810
    %v819 = vmul.f32 %v763, %v811
    %v820 = vmul.f32 %v324, %v284
    %v821 = vmul.f32 %v325, %v285
    %v822 = vmul.f32 %v326, %v286
    %v823 = vmul.f32 %v327, %v287
    %v824 = vmul.f32 %v328, %v288
    %v825 = vmul.f32 %v329, %v289
    %v826 = vmul.f32 %v330, %v290
    %v827 = vmul.f32 %v331, %v291
    %v828 = vmul.f32 %v428, %v292
    %v829 = vmul.f32 %v429, %v293
    %v830 = vmul.f32 %v430, %v294
    %v831 = vmul.f32 %v431, %v295
    %v832 = vmul.f32 %v432, %v296
    %v833 = vmul.f32 %v433, %v297
    %v834 = vmul.f32 %v434, %v298
    %v835 = vmul.f32 %v435, %v299
    %v836 = vadd.f32 %v820, %v828
    %v837 = vadd.f32 %v821, %v829
    %v838 = vadd.f32 %v822, %v830
    %v839 = vadd.f32 %v823, %v831
    %v840 = vadd.f32 %v824, %v832
    %v841 = vadd.f32 %v825, %v833
    %v842 = vadd.f32 %v826, %v834
    %v843 = vadd.f32 %v827, %v835
    %v844 = vmul.f32 %v588, 1.25
    %v845 = vmul.f32 %v589, 1.25
    %v846 = vmul.f32 %v590, 1.25
    %v847 = vmul.f32 %v591, 1.25
    %v848 = vmul.f32 %v592, 1.25
    %v849 = vmul.f32 %v593, 1.25
    %v850 = vmul.f32 %v594, 1.25
    %v851 = vmul.f32 %v595, 1.25
    %v852 = vsub.f32 %v812, %v844
    %v853 = vsub.f32 %v813, %v845
    %v854 = vsub.f32 %v814, %v846
    %v855 = vsub.f32 %v815, %v847
    %v856 = vsub.f32 %v816, %v848
    %v857 = vsub.f32 %v817, %v849
    %v858 = vsub.f32 %v818, %v850
    %v859 = vsub.f32 %v819, %v851
    %v860 = vmul.f32 %v852, 1e-06
    %v861 = vmul.f32 %v853, 1e-06
    %v862 = vmul.f32 %v854, 1e-06
    %v863 = vmul.f32 %v855, 1e-06
    %v864 = vmul.f32 %v856, 1e-06
    %v865 = vmul.f32 %v857, 1e-06
    %v866 = vmul.f32 %v858, 1e-06
    %v867 = vmul.f32 %v859, 1e-06
    %v868 = vmul.f32 %v588, 1e-06
    %v869 = vmul.f32 %v589, 1e-06
    %v870 = vmul.f32 %v590, 1e-06
    %v871 = vmul.f32 %v591, 1e-06
    %v872 = vmul.f32 %v592, 1e-06
    %v873 = vmul.f32 %v593, 1e-06
    %v874 = vmul.f32 %v594, 1e-06
    %v875 = vmul.f32 %v595, 1e-06
    %v876 = vmul.f32 %v860, 0.1
    %v877 = vmul.f32 %v861, 0.1
    %v878 = vmul.f32 %v862, 0.1
    %v879 = vmul.f32 %v863, 0.1
    %v880 = vmul.f32 %v864, 0.1
    %v881 = vmul.f32 %v865, 0.1
    %v882 = vmul.f32 %v866, 0.1
    %v883 = vmul.f32 %v867, 0.1
    %884 = vst [vmem:[#allocation14] sm:$0xff] %v876
    %885 = vst [vmem:[#allocation14 + $0x8] sm:$0xff] %v877
    %886 = vst [vmem:[#allocation14 + $0x10] sm:$0xff] %v878
    %887 = vst [vmem:[#allocation14 + $0x18] sm:$0xff] %v879
    %888 = vst [vmem:[#allocation14 + $0x20] sm:$0xff] %v880
    %889 = vst [vmem:[#allocation14 + $0x28] sm:$0xff] %v881
    %890 = vst [vmem:[#allocation14 + $0x30] sm:$0xff] %v882
    %891 = vst [vmem:[#allocation14 + $0x38] sm:$0xff] %v883
    %v892 = vmul.f32 %v868, 0.2
    %v893 = vmul.f32 %v869, 0.2
    %v894 = vmul.f32 %v870, 0.2
    %v895 = vmul.f32 %v871, 0.2
    %v896 = vmul.f32 %v872, 0.2
    %v897 = vmul.f32 %v873, 0.2
    %v898 = vmul.f32 %v874, 0.2
    %v899 = vmul.f32 %v875, 0.2
    %900 = vst [vmem:[#allocation15] sm:$0xff] %v892
    %901 = vst [vmem:[#allocation15 + $0x8] sm:$0xff] %v893
    %902 = vst [vmem:[#allocation15 + $0x10] sm:$0xff] %v894
    %903 = vst [vmem:[#allocation15 + $0x18] sm:$0xff] %v895
    %904 = vst [vmem:[#allocation15 + $0x20] sm:$0xff] %v896
    %905 = vst [vmem:[#allocation15 + $0x28] sm:$0xff] %v897
    %906 = vst [vmem:[#allocation15 + $0x30] sm:$0xff] %v898
    %907 = vst [vmem:[#allocation15 + $0x38] sm:$0xff] %v899
    %v908 = vrcp.pop %v836
    %v909 = vrcp.pop %v837
    %v910 = vrcp.pop %v838
    %v911 = vrcp.pop %v839
    %v912 = vrcp.pop %v840
    %v913 = vrcp.pop %v841
    %v914 = vrcp.pop %v842
    %v915 = vrcp.pop %v843
    %v916 = vmul.f32 %v836, %v908
    %v917 = vmul.f32 %v837, %v909
    %v918 = vmul.f32 %v838, %v910
    %v919 = vmul.f32 %v839, %v911
    %v920 = vmul.f32 %v840, %v912
    %v921 = vmul.f32 %v841, %v913
    %v922 = vmul.f32 %v842, %v914
    %v923 = vmul.f32 %v843, %v915
    %v924 = vsub.f32 2.0, %v916
    %v925 = vsub.f32 2.0, %v917
    %v926 = vsub.f32 2.0, %v918
    %v927 = vsub.f32 2.0, %v919
    %v928 = vsub.f32 2.0, %v920
    %v929 = vsub.f32 2.0, %v921
    %v930 = vsub.f32 2.0, %v922
    %v931 = vsub.f32 2.0, %v923
    %v932 = vmul.f32 %v908, %v924
    %v933 = vmul.f32 %v909, %v925
    %v934 = vmul.f32 %v910, %v926
    %v935 = vmul.f32 %v911, %v927
    %v936 = vmul.f32 %v912, %v928
    %v937 = vmul.f32 %v913, %v929
    %v938 = vmul.f32 %v914, %v930
    %v939 = vmul.f32 %v915, %v931
    %v940 = vmul.f32 %v932, 0.1
    %v941 = vmul.f32 %v933, 0.1
    %v942 = vmul.f32 %v934, 0.1
    %v943 = vmul.f32 %v935, 0.1
    %v944 = vmul.f32 %v936, 0.1
    %v945 = vmul.f32 %v937, 0.1
    %v946 = vmul.f32 %v938, 0.1
    %v947 = vmul.f32 %v939, 0.1
    %948 = vst [vmem:[#allocation17] sm:$0xff] %v940
    %949 = vst [vmem:[#allocation17 + $0x8] sm:$0xff] %v941
    %950 = vst [vmem:[#allocation17 + $0x10] sm:$0xff] %v942
    %951 = vst [vmem:[#allocation17 + $0x18] sm:$0xff] %v943
    %952 = vst [vmem:[#allocation17 + $0x20] sm:$0xff] %v944
    %953 = vst [vmem:[#allocation17 + $0x28] sm:$0xff] %v945
    %954 = vst [vmem:[#allocation17 + $0x30] sm:$0xff] %v946
    %955 = vst [vmem:[#allocation17 + $0x38] sm:$0xff] %v947
    // Predicated region
    $region58: #{tpu_custom_call.1} parent=1 // pred_check
      _
    $region59: #{tpu_custom_call.1} parent=1 // pred_check_branch
      %957 = sbr.rel (0) target = $region61
    $region60: #{tpu_custom_call.1} parent=1 // pred_region
      %959 = vsyncadd [#allocation4], 0
      %s960 = sshll.u32 [#allocation14], 4
      %s961 = int_to_ptr.vmem [resolvable:$true] %s960
      %s962 = sshll.u32 %s7, 4
      %s963 = int_to_ptr.hbm [resolvable:$true] %s962
      %968 = dma.vmem_to_hbm [thread:$0]  %s961, 1024, %s963, [#allocation4], 128, 128, 8
    $region61: #{tpu_custom_call.1} parent=1 // pred_fallthru
      _
    // Predicated region
    $region62: #{tpu_custom_call.1} parent=1 // pred_check
      _
    $region63: #{tpu_custom_call.1} parent=1 // pred_check_branch
      %970 = sbr.rel (0) target = $region65
    $region64: #{tpu_custom_call.1} parent=1 // pred_region
      %972 = vsyncadd [#allocation16], 0
      %s973 = sshll.u32 [#allocation15], 4
      %s974 = int_to_ptr.vmem [resolvable:$true] %s973
      %s975 = sshll.u32 %s8, 4
      %s976 = int_to_ptr.hbm [resolvable:$true] %s975
      %981 = dma.vmem_to_hbm [thread:$0]  %s974, 1024, %s976, [#allocation16], 128, 128, 8
    $region65: #{tpu_custom_call.1} parent=1 // pred_fallthru
      _
    // Predicated region
    $region66: #{tpu_custom_call.1} parent=1 // pred_check
      _
    $region67: #{tpu_custom_call.1} parent=1 // pred_check_branch
      %983 = sbr.rel (0) target = $region69
    $region68: #{tpu_custom_call.1} parent=1 // pred_region
      %985 = vsyncadd [#allocation16], 0
      %s986 = sshll.u32 [#allocation17], 4
      %s987 = int_to_ptr.vmem [resolvable:$true] %s986
      %s988 = sshll.u32 %s9, 4
      %s989 = int_to_ptr.hbm [resolvable:$true] %s988
      %994 = dma.vmem_to_hbm [thread:$0]  %s987, 1024, %s989, [#allocation16], 128, 128, 8
    $region69: #{tpu_custom_call.1} parent=1 // pred_fallthru
      _
    // Predicated region
    $region70: #{tpu_custom_call.1} parent=1 // pred_check
      _
    $region71: #{tpu_custom_call.1} parent=1 // pred_check_branch
      %996 = sbr.rel (0) target = $region73
    $region72: #{tpu_custom_call.1} parent=1 // pred_region
      %998 = dma.done [#allocation4], 1024
    $region73: #{tpu_custom_call.1} parent=1 // pred_fallthru
      _
    // Predicated region
    $region74: #{tpu_custom_call.1} parent=1 // pred_check
      _
    $region75: #{tpu_custom_call.1} parent=1 // pred_check_branch
      %1000 = sbr.rel (0) target = $region77
    $region76: #{tpu_custom_call.1} parent=1 // pred_region
      %1002 = dma.done [#allocation16], 1024
    $region77: #{tpu_custom_call.1} parent=1 // pred_fallthru
      _
    // Predicated region
    $region78: #{tpu_custom_call.1} parent=1 // pred_check
      _
    $region79: #{tpu_custom_call.1} parent=1 // pred_check_branch
      %1004 = sbr.rel (0) target = $region81
    $region80: #{tpu_custom_call.1} parent=1 // pred_region
      %1006 = dma.done [#allocation16], 1024
    $region81: #{tpu_custom_call.1} parent=1 // pred_fallthru
      _
    %1007 = vsyncpa [#allocation3], 1
    %1008 = vsyncpa [#allocation6], 1
    %1009 = vsyncpa [#allocation9], 1
    %1010 = vsyncpa [#allocation12], 1
    %1011 = vsyncpa [#allocation4], 1
    %1012 = vsyncpa [#allocation16], 1

</llo_original>
